<compile_context>
chip_gen: v6e
topology: v6e:2x2x1
jax: 0.10.0
libtpu: 0.0.40
codegen_flags: <defaults>
</compile_context>

<pallas_src>
import functools

import jax
import jax.numpy as jnp
from jax.experimental import pallas as pl
from jax.experimental.pallas import tpu as pltpu

_PAD = 2  # ZeroPad2d(2)


def _fused_conv1x1_mul_kernel(x_ref, w_ref, b_ref, o_ref):
    # x_ref : (1, C_in, THW)   VMEM, spatial (lane-dense) last
    # w_ref : (C_out, C_in)    SMEM scalars
    # b_ref : (C_out,)         SMEM scalars
    # o_ref : (1, C_final, THW)
    x = x_ref[...].astype(jnp.float32)        # (1, C_in, THW)
    c_out, c_in = w_ref.shape

    gs = []
    for oc in range(c_out):
        # 1x1 conv for this output channel: unrolled VPU FMA chain over C_in.
        v2 = x[:, 0, :] * w_ref[oc, 0]
        for ic in range(1, c_in):
            v2 = v2 + x[:, ic, :] * w_ref[oc, ic]
        v2 = v2 + b_ref[oc]
        # out = sigmoid(v2) * (v1 * v2) = v1 * (v2 * sigmoid(v2))
        gs.append(v2 * jax.nn.sigmoid(v2))    # (1, THW)

    if c_out == 1:
        g = gs[0][:, None, :]                 # broadcast across v1's channels
    else:
        g = jnp.stack(gs, axis=1)             # per-channel (c_out == c_in)
    o_ref[...] = (x * g).astype(o_ref.dtype)


def _pick_spatial_tile(hw, c_in, c_final, vmem_budget_bytes=8 << 20):
    """Largest multiple-of-128 divisor of hw whose (in+out, double-buffered)
    tiles fit the VMEM budget; falls back to the full spatial extent."""
    if hw % 128 != 0:
        return hw
    bytes_per_col = 4 * (c_in + c_final) * 2   # f32, double-buffered in + out
    max_cols = max(128, (vmem_budget_bytes // bytes_per_col) // 128 * 128)
    best = 128
    t = 128
    while t <= hw and t <= max_cols:
        if hw % t == 0:
            best = t
        t += 128
    return best


@jax.jit
def model_forward(x, weight, bias):
    """x: (N, C_in, H, W) NCHW f32; weight: (C_out, C_in, 1, 1); bias: (C_out,)."""
    n, c_in, h, w = x.shape
    c_out = weight.shape[0]
    assert c_out == 1 or c_out == c_in, "multiply requires broadcastable channels"
    c_final = max(c_in, c_out)
    hw = h * w

    # Free reshape (NCHW is already contiguous in (n, c, h*w)).
    x_flat = x.reshape(n, c_in, hw)
    w2 = weight.reshape(c_out, c_in).astype(jnp.float32)
    b1 = bias.astype(jnp.float32)

    thw = _pick_spatial_tile(hw, c_in, c_final)
    grid = (n, hw // thw)

    out_flat = pl.pallas_call(
        _fused_conv1x1_mul_kernel,
        out_shape=jax.ShapeDtypeStruct((n, c_final, hw), jnp.float32),
        grid_spec=pltpu.PrefetchScalarGridSpec(
            num_scalar_prefetch=0,
            grid=grid,
            in_specs=[
                pl.BlockSpec((1, c_in, thw), lambda i, j: (i, 0, j)),
                pl.BlockSpec(memory_space=pltpu.MemorySpace.SMEM),
                pl.BlockSpec(memory_space=pltpu.MemorySpace.SMEM),
            ],
            out_specs=pl.BlockSpec((1, c_final, thw), lambda i, j: (i, 0, j)),
        ),
        compiler_params=pltpu.CompilerParams(
            dimension_semantics=("parallel", "parallel"),
            vmem_limit_bytes=32 << 20,
        ),
    )(x_flat, w2, b1)

    out = out_flat.reshape(n, c_final, h, w)
    # Padded border of the module output is exactly 0 (v4 = 0 * v2 there).
    return jnp.pad(out, ((0, 0), (0, 0), (_PAD, _PAD), (_PAD, _PAD)))


def _reference(x, weight, bias):
    """Pure-JAX reference of the forward pass (for a sanity check)."""
    v1 = jnp.pad(x, ((0, 0), (0, 0), (_PAD, _PAD), (_PAD, _PAD)))
    w2 = weight.reshape(weight.shape[0], weight.shape[1])        # (C_out, C_in)
    v2 = jnp.einsum("nchw,oc->nohw", v1, w2) + bias[None, :, None, None]
    v3 = jax.nn.sigmoid(v2)
    v4 = v1 * v2
    return v3 * v4


if __name__ == "__main__":
    key = jax.random.PRNGKey(0)
    k_x, k_w, k_b = jax.random.split(key, 3)

    # Small shapes consistent with the forward (see TODO above re: channels).
    N, C_IN, C_OUT, H, W = 2, 4, 1, 16, 16

    x = jax.random.normal(k_x, (N, C_IN, H, W), dtype=jnp.float32)
    weight = jax.random.normal(k_w, (C_OUT, C_IN, 1, 1), dtype=jnp.float32) / jnp.sqrt(C_IN)
    bias = 0.1 * jax.random.normal(k_b, (C_OUT,), dtype=jnp.float32)

    out = jax.block_until_ready(model_forward(x, weight, bias))

    ref = _reference(x, weight, bias)
    assert out.shape == (N, C_IN, H + 2 * _PAD, W + 2 * _PAD), out.shape
    assert jnp.allclose(out, ref, atol=1e-5, rtol=1e-5), "mismatch vs JAX reference"

    print("KERNEL_OK")
</pallas_src>

<mosaic_0001>
module attributes {stable_mosaic.version = 11 : i64} {
  func.func @_fused_conv1x1_mul_kernel(%arg0: i32, %arg1: i32, %arg2: memref<1x4x256xf32, #tpu.memory_space<vmem>>, %arg3: memref<1x4xf32, #tpu.memory_space<smem>>, %arg4: memref<1xf32, #tpu.memory_space<smem>>, %arg5: memref<1x4x256xf32, #tpu.memory_space<vmem>>) attributes {dimension_semantics = [#tpu.dimension_semantics<parallel>, #tpu.dimension_semantics<parallel>], iteration_bounds = array<i64: 2, 1>, scalar_prefetch = 0 : i64, scratch_operands = 0 : i64, tpu.core_type = #tpu.core_type<tc>, window_params = [{transform_indices = @transform_0, window_bounds = array<i64: 1, 4, 256>}, {transform_indices = @transform_1, window_bounds = array<i64: 1, 4>}, {transform_indices = @transform_2, window_bounds = array<i64: 1>}, {transform_indices = @transform_3, window_bounds = array<i64: 1, 4, 256>}]} {
    %c0 = arith.constant 0 : index
    %c0_0 = arith.constant 0 : index
    %c0_1 = arith.constant 0 : index
    %0 = vector.load %arg2[%c0, %c0_0, %c0_1] : memref<1x4x256xf32, #tpu.memory_space<vmem>>, vector<1x4x256xf32>
    %1 = vector.extract_strided_slice %0 {offsets = [0, 0, 0], sizes = [1, 1, 256], strides = [1, 1, 1]} : vector<1x4x256xf32> to vector<1x1x256xf32>
    %2 = vector.shape_cast %1 : vector<1x1x256xf32> to vector<1x256xf32>
    %c0_2 = arith.constant 0 : index
    %c0_3 = arith.constant 0 : index
    %3 = memref.load %arg3[%c0_2, %c0_3] : memref<1x4xf32, #tpu.memory_space<smem>>
    %4 = vector.broadcast %3 : f32 to vector<1x256xf32>
    %5 = arith.mulf %2, %4 : vector<1x256xf32>
    %6 = vector.extract_strided_slice %0 {offsets = [0, 1, 0], sizes = [1, 1, 256], strides = [1, 1, 1]} : vector<1x4x256xf32> to vector<1x1x256xf32>
    %7 = vector.shape_cast %6 : vector<1x1x256xf32> to vector<1x256xf32>
    %c0_4 = arith.constant 0 : index
    %c1 = arith.constant 1 : index
    %8 = memref.load %arg3[%c0_4, %c1] : memref<1x4xf32, #tpu.memory_space<smem>>
    %9 = vector.broadcast %8 : f32 to vector<1x256xf32>
    %10 = arith.mulf %7, %9 : vector<1x256xf32>
    %11 = arith.addf %5, %10 : vector<1x256xf32>
    %12 = vector.extract_strided_slice %0 {offsets = [0, 2, 0], sizes = [1, 1, 256], strides = [1, 1, 1]} : vector<1x4x256xf32> to vector<1x1x256xf32>
    %13 = vector.shape_cast %12 : vector<1x1x256xf32> to vector<1x256xf32>
    %c0_5 = arith.constant 0 : index
    %c2 = arith.constant 2 : index
    %14 = memref.load %arg3[%c0_5, %c2] : memref<1x4xf32, #tpu.memory_space<smem>>
    %15 = vector.broadcast %14 : f32 to vector<1x256xf32>
    %16 = arith.mulf %13, %15 : vector<1x256xf32>
    %17 = arith.addf %11, %16 : vector<1x256xf32>
    %18 = vector.extract_strided_slice %0 {offsets = [0, 3, 0], sizes = [1, 1, 256], strides = [1, 1, 1]} : vector<1x4x256xf32> to vector<1x1x256xf32>
    %19 = vector.shape_cast %18 : vector<1x1x256xf32> to vector<1x256xf32>
    %c0_6 = arith.constant 0 : index
    %c3 = arith.constant 3 : index
    %20 = memref.load %arg3[%c0_6, %c3] : memref<1x4xf32, #tpu.memory_space<smem>>
    %21 = vector.broadcast %20 : f32 to vector<1x256xf32>
    %22 = arith.mulf %19, %21 : vector<1x256xf32>
    %23 = arith.addf %17, %22 : vector<1x256xf32>
    %c0_7 = arith.constant 0 : index
    %24 = memref.load %arg4[%c0_7] : memref<1xf32, #tpu.memory_space<smem>>
    %25 = vector.broadcast %24 : f32 to vector<1x256xf32>
    %26 = arith.addf %23, %25 : vector<1x256xf32>
    %27 = arith.negf %26 : vector<1x256xf32>
    %28 = math.exp %27 : vector<1x256xf32>
    %cst = arith.constant 1.000000e+00 : f32
    %29 = vector.broadcast %cst : f32 to vector<1x256xf32>
    %30 = arith.addf %29, %28 : vector<1x256xf32>
    %31 = arith.divf %29, %30 : vector<1x256xf32>
    %32 = arith.mulf %26, %31 : vector<1x256xf32>
    %33 = vector.shape_cast %32 : vector<1x256xf32> to vector<1x1x256xf32>
    %34 = vector.broadcast %33 : vector<1x1x256xf32> to vector<1x4x256xf32>
    %35 = arith.mulf %0, %34 : vector<1x4x256xf32>
    %c0_8 = arith.constant 0 : index
    %c0_9 = arith.constant 0 : index
    %c0_10 = arith.constant 0 : index
    %36 = vector.load %arg5[%c0_8, %c0_9, %c0_10] : memref<1x4x256xf32, #tpu.memory_space<vmem>>, vector<1x4x256xf32>
    tpu.vector_store %arg5[%c0_8, %c0_9, %c0_10], %35 {strides = array<i32>} : memref<1x4x256xf32, #tpu.memory_space<vmem>>, vector<1x4x256xf32>,
    return
  }
  func.func @transform_0(%arg0: i32, %arg1: i32) -> (i32, i32, i32) {
    %c0_i32 = arith.constant 0 : i32
    %c0_i32_0 = arith.constant 0 : i32
    return %arg0, %c0_i32, %arg1 : i32, i32, i32
  }
  func.func @transform_1(%arg0: i32, %arg1: i32) -> (i32, i32) {
    %c0_i32 = arith.constant 0 : i32
    %c0_i32_0 = arith.constant 0 : i32
    %c0_i32_1 = arith.constant 0 : i32
    return %c0_i32, %c0_i32_0 : i32, i32
  }
  func.func @transform_2(%arg0: i32, %arg1: i32) -> i32 {
    %c0_i32 = arith.constant 0 : i32
    %c0_i32_0 = arith.constant 0 : i32
    return %c0_i32 : i32
  }
  func.func @transform_3(%arg0: i32, %arg1: i32) -> (i32, i32, i32) {
    %c0_i32 = arith.constant 0 : i32
    %c0_i32_0 = arith.constant 0 : i32
    return %arg0, %c0_i32, %arg1 : i32, i32, i32
  }
}

</mosaic_0001>

<llo_original>
// kernel: model_forward.1
$region0: #{model_forward.1}
  #allocation0 [shape = 'u32[]', space=smem, size = 0x4, offset = 0x4, fixed_abs, tag = 'smem constant byte address 0x4 - core index']
  #allocation1 [shape = 'u32[144,128]{1,0:T(1,128)}', space=vmem, size = 0x12000, scoped, tag = 'internal scratch']
  #allocation2 [shape = 'f32[1]{0:T(128)S(6)}', space=smem, size = 0x200, scoped, tag = 'scoped memory for model_forward.1']
  %s0 = inlined_call_operand.vmem [shape: f32[2,4,256], index: 0, kind: input, shape index: {}]
  %s1 = inlined_call_operand.vmem [shape: f32[1,4], index: 1, kind: input, shape index: {}]
  %s2 = inlined_call_operand.<no memory space> [shape: f32[1], index: 2, kind: input, shape index: {}]
  %s3 = inlined_call_operand.vmem [shape: f32[2,4,256], index: 3, kind: output, shape index: {}]
  %s4 = sld [smem:[#allocation0]]
  $region49: #{model_forward.1} parent=0
    _
  %s6 = ssub.s32 1, %s4
  %s7 = scalar_select 0, %s6, %s4
  %8 = sst [smem:[#allocation2]] %s2
  $region1: #{model_forward.1} parent=0
    #allocation3 [shape = 'u8[512]{0}', space=smem, size = 0x200, scoped, tag = 'input window, operand 1, single buffered']
    #allocation4 [shape = 's32[2]{0}', space=sflag, size = 0x8, scoped, tag = 'scoped memory for model_forward.1']
    %9 = vsyncpa [#allocation4], 0
    loop: start=0, step=1, limit=4
    $region2: #{model_forward.1} parent=1 // loop_pre_header
      _
    $region3: #{model_forward.1} parent=1 // loop_header
      %s11 = sphi 0, %s15
      %p12 = scmp.ge.s32.totalorder %s11, 4
      %s18 = sphi 0, %s30
      %s19 = sphi 0, %s26
      %s20 = sphi 0, %s18
      %s21 = sphi 0, %s19
      %s22 = sphi 0, %s20
      %s23 = sphi 0, %s21
      %s35 = sphi 0, %s37
      %s38 = sphi 0, %s35
      %s39 = sphi 0, %s38
      %s55 = sphi 0, %s39
      %s59 = sphi 0, %s59
      %s61 = sphi 0, %s59
      %s62 = sphi 0, %s61
      %s76 = sphi 0, %s62
      %s80 = sphi 0, %s80
      %s82 = sphi 0, %s80
      %s83 = sphi 0, %s82
      %s97 = sphi 0, %s83
      %s105 = sphi 0, %s107
      %s108 = sphi 0, %s105
      %s109 = sphi 0, %s108
      %s125 = sphi 0, %s109
    $region4: #{model_forward.1} parent=1 // loop_header_branch
      %14 = sbr.rel (%p12) target = $region8
    $region5: #{model_forward.1} parent=1 // loop_body
      %s16 = ssub.s32 %s11, 1
      %s17 = ssub.s32 %s11, 2
      %s24 = sadd.s32 1, %s19
      %p25 = scmp.ge.s32.totalorder %s24, 1
      %s26 = scalar_select %p25, 0, %s24
      %s27 = sadd.s32 1, %s18
      %s28 = scalar_select %p25, %s27, %s18
      %p29 = scmp.ge.s32.totalorder %s28, 2
      %s30 = scalar_select %p29, 0, %s28
      %s31 = ssub.s32 %s18, %s30
      %s32 = ssub.s32 %s19, %s26
      %s33 = sor.u32 %s31, %s32
      %p34 = scmp.eq.s32.totalorder %s33, 0
      %s36 = sadd.s32 %s35, 1
      %s37 = scalar_select %p34, %s35, %s36
      %p40 = pneg %p34
      %p41 = scmp.eq.s32.totalorder %s11, 1
      %p42 = por %p40, %p41
      %p43 = scmp.ne.s32.totalorder %s35, %s38
      %p44 = scmp.eq.s32.totalorder %s11, 0
      %p45 = por %p43, %p44
      %p46 = scmp.ne.s32.totalorder %s35, %s38
      %p47 = scmp.eq.s32.totalorder %s16, 1
      %p48 = por %p46, %p47
      %p49 = scmp.ne.s32.totalorder %s38, %s39
      %p50 = scmp.eq.s32.totalorder %s16, 0
      %p51 = por %p49, %p50
      %p52 = scmp.ne.s32.totalorder %s38, %s39
      %p53 = scmp.eq.s32.totalorder %s17, 1
      %p54 = por %p52, %p53
      %p56 = scmp.ne.s32.totalorder %s39, %s55
      %p57 = scmp.eq.s32.totalorder %s17, 0
      %p58 = por %p56, %p57
      %s60 = sadd.s32 %s59, 1
      %p63 = scmp.eq.s32.totalorder %s11, 1
      %p64 = scmp.ne.s32.totalorder %s59, %s61
      %p65 = scmp.eq.s32.totalorder %s11, 0
      %p66 = por %p64, %p65
      %p67 = scmp.ne.s32.totalorder %s59, %s61
      %p68 = scmp.eq.s32.totalorder %s16, 1
      %p69 = por %p67, %p68
      %p70 = scmp.ne.s32.totalorder %s61, %s62
      %p71 = scmp.eq.s32.totalorder %s16, 0
      %p72 = por %p70, %p71
      %p73 = scmp.ne.s32.totalorder %s61, %s62
      %p74 = scmp.eq.s32.totalorder %s17, 1
      %p75 = por %p73, %p74
      %p77 = scmp.ne.s32.totalorder %s62, %s76
      %p78 = scmp.eq.s32.totalorder %s17, 0
      %p79 = por %p77, %p78
      %s81 = sadd.s32 %s80, 1
      %p84 = scmp.eq.s32.totalorder %s11, 1
      %p85 = scmp.ne.s32.totalorder %s80, %s82
      %p86 = scmp.eq.s32.totalorder %s11, 0
      %p87 = por %p85, %p86
      %p88 = scmp.ne.s32.totalorder %s80, %s82
      %p89 = scmp.eq.s32.totalorder %s16, 1
      %p90 = por %p88, %p89
      %p91 = scmp.ne.s32.totalorder %s82, %s83
      %p92 = scmp.eq.s32.totalorder %s16, 0
      %p93 = por %p91, %p92
      %p94 = scmp.ne.s32.totalorder %s82, %s83
      %p95 = scmp.eq.s32.totalorder %s17, 1
      %p96 = por %p94, %p95
      %p98 = scmp.ne.s32.totalorder %s83, %s97
      %p99 = scmp.eq.s32.totalorder %s17, 0
      %p100 = por %p98, %p99
      %s101 = ssub.s32 %s18, %s30
      %s102 = ssub.s32 %s19, %s26
      %s103 = sor.u32 %s101, %s102
      %p104 = scmp.eq.s32.totalorder %s103, 0
      %s106 = sadd.s32 %s105, 1
      %s107 = scalar_select %p104, %s105, %s106
      %p110 = pneg %p104
      %p111 = scmp.eq.s32.totalorder %s11, 1
      %p112 = por %p110, %p111
      %p113 = scmp.ne.s32.totalorder %s105, %s108
      %p114 = scmp.eq.s32.totalorder %s11, 0
      %p115 = por %p113, %p114
      %p116 = scmp.ne.s32.totalorder %s105, %s108
      %p117 = scmp.eq.s32.totalorder %s16, 1
      %p118 = por %p116, %p117
      %p119 = scmp.ne.s32.totalorder %s108, %s109
      %p120 = scmp.eq.s32.totalorder %s16, 0
      %p121 = por %p119, %p120
      %p122 = scmp.ne.s32.totalorder %s108, %s109
      %p123 = scmp.eq.s32.totalorder %s17, 1
      %p124 = por %p122, %p123
      %p126 = scmp.ne.s32.totalorder %s109, %s125
      %p127 = scmp.eq.s32.totalorder %s17, 0
      %p128 = por %p126, %p127
      %p129 = scmp.le.s32.totalorder 1, %s11
      %p130 = scmp.lt.s32.totalorder %s11, 3
      %p131 = pnand %p129, %p130
      %p132 = pneg %p131
      // Predicated region
      $region9: #{model_forward.1} parent=5 // pred_check
        _
      $region10: #{model_forward.1} parent=5 // pred_check_branch
        %134 = sbr.rel (%p131) target = $region12
      $region11: #{model_forward.1} parent=5 // pred_region
        %s135 = ssub.s32 %s11, 1
        // Predicated region
        $region13: #{model_forward.1} parent=11 // pred_check
          %p136 = pneg %p72
        $region14: #{model_forward.1} parent=11 // pred_check_branch
          %138 = sbr.rel (%p136) target = $region16
        $region15: #{model_forward.1} parent=11 // pred_region
          %s140 = ssub.s32 16, 16
          %141 = vsyncadd [#allocation4], %s140
          %s143 = sshll.u32 %s1, 4
          %s144 = int_to_ptr.vmem [resolvable:$true] %s143
          %146 = dma.vmem_to_smem %s144, 16, [#allocation3], [#allocation4]
        $region16: #{model_forward.1} parent=11 // pred_fallthru
          _
        // Predicated region
        $region17: #{model_forward.1} parent=11 // pred_check
          %p147 = pneg %p93
        $region18: #{model_forward.1} parent=11 // pred_check_branch
          %149 = sbr.rel (%p147) target = $region20
        $region19: #{model_forward.1} parent=11 // pred_region
          _
        $region20: #{model_forward.1} parent=11 // pred_fallthru
          _
      $region12: #{model_forward.1} parent=5 // pred_fallthru
        _
      %p150 = scmp.lt.s32.totalorder %s11, 2
      // Predicated region
      $region21: #{model_forward.1} parent=5 // pred_check
        %p151 = pneg %p150
      $region22: #{model_forward.1} parent=5 // pred_check_branch
        %153 = sbr.rel (%p151) target = $region24
      $region23: #{model_forward.1} parent=5 // pred_region
        // Predicated region
        $region25: #{model_forward.1} parent=23 // pred_check
          %p154 = pneg %p45
        $region26: #{model_forward.1} parent=23 // pred_check_branch
          %156 = sbr.rel (%p154) target = $region28
        $region27: #{model_forward.1} parent=23 // pred_region
          %s157 = smul.u32 2, %s19
          %p158 = scmp.lt.s32.totalorder %s18, 1
          %s159 = scalar_select %p158, %s18, 1
          %p160 = scmp.lt.s32.totalorder %s157, 1
          %s161 = scalar_select %p160, %s157, 1
          %s162 = smul.addr %s159, 2
          %s163 = sadd.s32 %s161, %s162
          %s164 = smul.addr %s163, 4
          %s165 = scalar_lea.vmem %s0, %s164
          %s166 = smul.u32 2, %s19
        $region28: #{model_forward.1} parent=23 // pred_fallthru
          _
      $region24: #{model_forward.1} parent=5 // pred_fallthru
        _
      %p167 = scmp.le.s32.totalorder 1, %s11
      %p168 = scmp.lt.s32.totalorder %s11, 3
      %p169 = pnand %p167, %p168
      %p170 = pneg %p169
      // Predicated region
      $region29: #{model_forward.1} parent=5 // pred_check
        _
      $region30: #{model_forward.1} parent=5 // pred_check_branch
        %172 = sbr.rel (%p169) target = $region32
      $region31: #{model_forward.1} parent=5 // pred_region
        %s173 = ssub.s32 %s11, 1
        // Predicated region
        $region33: #{model_forward.1} parent=31 // pred_check
          %p174 = pneg %p72
        $region34: #{model_forward.1} parent=31 // pred_check_branch
          %176 = sbr.rel (%p174) target = $region36
        $region35: #{model_forward.1} parent=31 // pred_region
          %177 = dma.done [#allocation4], 16
        $region36: #{model_forward.1} parent=31 // pred_fallthru
          _
        %178 = sfence
        %s179 = smul.u32 2, %s21
        %p180 = scmp.lt.s32.totalorder %s20, 1
        %s181 = scalar_select %p180, %s20, 1
        %p182 = scmp.lt.s32.totalorder %s179, 1
        %s183 = scalar_select %p182, %s179, 1
        %s184 = smul.addr %s181, 2
        %s185 = sadd.s32 %s183, %s184
        %s186 = smul.addr %s185, 4
        %s187 = scalar_lea.vmem %s0, %s186
        %p188 = pneg %p51
        %p189 = pneg %p48
        %p190 = pneg %p72
        %p191 = pneg %p69
        %p192 = pneg %p93
        %p193 = pneg %p90
        %p194 = pneg %p121
        %p195 = pneg %p118
        %s196 = smul.u32 2, %s21
        %p197 = scmp.lt.s32.totalorder %s20, 1
        %s198 = scalar_select %p197, %s20, 1
        %p199 = scmp.lt.s32.totalorder %s196, 1
        %s200 = scalar_select %p199, %s196, 1
        %s201 = smul.addr %s198, 2
        %s202 = sadd.s32 %s200, %s201
        %s203 = smul.addr %s202, 4
        %s204 = scalar_lea.vmem %s3, %s203
        %s205 = smul.u32 2, %s21
        %p206 = scmp.lt.s32.totalorder %s20, 1
        %s207 = scalar_select %p206, %s20, 1
        %p208 = scmp.lt.s32.totalorder %s205, 1
        %s209 = scalar_select %p208, %s205, 1
        %s210 = smul.addr %s207, 2
        %s211 = sadd.s32 %s209, %s210
        %s212 = smul.addr %s211, 4
        %s213 = scalar_lea.vmem %s0, %s212
        %s214 = smul.u32 2, %s21
        %s215 = smul.u32 2, %s21
        %p216 = scmp.lt.s32.totalorder %s20, 1
        %s217 = scalar_select %p216, %s20, 1
        %p218 = scmp.lt.s32.totalorder %s215, 1
        %s219 = scalar_select %p218, %s215, 1
        %s220 = smul.addr %s217, 2
        %s221 = sadd.s32 %s219, %s220
        %s222 = smul.addr %s221, 4
        %s223 = scalar_lea.vmem %s3, %s222
        %s224 = smul.u32 2, %s21
        %v225 = vld [vmem:[%s213] sm:$0xff]
        %s226 = sld [smem:[#allocation3]]
        %v227 = vstv %s226
        %v228 = vmul.f32 %v225, %v227
        %s229 = sld [smem:[#allocation3 + $0x1]]
        %v230 = vstv %s229
        %v231 = vmul.f32 %v225, %v230
        %v233 = vrot.slane %v231, 5
        %v234 = vrot.slane %v233, 4
        %v236 = vadd.f32 %v228, %v234
        %s237 = sld [smem:[#allocation3 + $0x2]]
        %v238 = vstv %s237
        %v239 = vmul.f32 %v225, %v238
        %v241 = vrot.slane %v239, 6
        %v242 = vrot.slane %v241, 4
        %v244 = vadd.f32 %v236, %v242
        %s245 = sld [smem:[#allocation3 + $0x3]]
        %v246 = vstv %s245
        %v247 = vmul.f32 %v225, %v246
        %v249 = vrot.slane %v247, 7
        %v250 = vrot.slane %v249, 4
        %v252 = vadd.f32 %v244, %v250
        %s253 = sld [smem:[#allocation2]]
        %v254 = vstv %s253
        %v255 = vadd.f32 %v252, %v254
        %v256 = vxor.u32 %v255, 2147483648
        %v257 = vmul.f32 %v256, 1.442695
        %v258 = vpow.pop %v257
        %v259 = vadd.f32 %v258, 1.0
        %v260 = vrcp.pop %v259
        %v261 = vmul.f32 1.0, %v260
        %v262 = vmul.f32 %v255, %v261
        %v264 = vlaneseq
        %v265 = vshrl.u32 %v264, 7
        %v266 = vsub.s32 0, %v265
        %v267 = vrot.slane %v262, %v266
        %v268 = vlaneseq
        %v269 = vshrl.u32 %v268, 7
        %v270 = vsub.s32 4, %v269
        %v271 = vrot.slane %v262, %v270
        %v274 = vlaneseq
        %v275 = vshrl.u32 %v274, 7
        %v276 = vsub.s32 0, %v275
        %v277 = vrot.slane %v267, %v276
        %v278 = vlaneseq
        %v279 = vshrl.u32 %v278, 7
        %v280 = vsub.s32 0, %v279
        %v281 = vrot.slane %v271, %v280
        %v284 = vcombine.low %v277, %v281
        %v286 = vmul.f32 %v225, %v284
        %287 = vst [vmem:[%s223] sm:$0xff] %v286
        %s288 = smul.u32 2, %s21
        %p289 = scmp.lt.s32.totalorder %s20, 1
        %s290 = scalar_select %p289, %s20, 1
        %p291 = scmp.lt.s32.totalorder %s288, 1
        %s292 = scalar_select %p291, %s288, 1
        %s293 = smul.addr %s290, 2
        %s294 = sadd.s32 %s292, %s293
        %s295 = smul.addr %s294, 4
        %s296 = scalar_lea.vmem %s3, %s295
        // Predicated region
        $region37: #{model_forward.1} parent=31 // pred_check
          %p297 = pneg %p118
        $region38: #{model_forward.1} parent=31 // pred_check_branch
          %299 = sbr.rel (%p297) target = $region40
        $region39: #{model_forward.1} parent=31 // pred_region
          %s300 = smul.u32 2, %s21
        $region40: #{model_forward.1} parent=31 // pred_fallthru
          _
      $region32: #{model_forward.1} parent=5 // pred_fallthru
        _
      %p301 = scmp.le.s32.totalorder 2, %s11
      // Predicated region
      $region41: #{model_forward.1} parent=5 // pred_check
        %p302 = pneg %p301
      $region42: #{model_forward.1} parent=5 // pred_check_branch
        %304 = sbr.rel (%p302) target = $region44
      $region43: #{model_forward.1} parent=5 // pred_region
        %s305 = ssub.s32 %s11, 2
        // Predicated region
        $region45: #{model_forward.1} parent=43 // pred_check
          %p306 = pneg %p124
        $region46: #{model_forward.1} parent=43 // pred_check_branch
          %308 = sbr.rel (%p306) target = $region48
        $region47: #{model_forward.1} parent=43 // pred_region
          %s309 = smul.u32 2, %s23
          %p310 = scmp.lt.s32.totalorder %s22, 1
          %s311 = scalar_select %p310, %s22, 1
          %p312 = scmp.lt.s32.totalorder %s309, 1
          %s313 = scalar_select %p312, %s309, 1
          %s314 = smul.addr %s311, 2
          %s315 = sadd.s32 %s313, %s314
          %s316 = smul.addr %s315, 4
          %s317 = scalar_lea.vmem %s3, %s316
        $region48: #{model_forward.1} parent=43 // pred_fallthru
          _
      $region44: #{model_forward.1} parent=5 // pred_fallthru
        _
    $region6: #{model_forward.1} parent=1 // loop_footer
      %s15 = sadd.s32 1, %s11
    $region7: #{model_forward.1} parent=1 // loop_footer_branch
      %10 = sbr.rel target = $region3
    $region8: #{model_forward.1} parent=1 // loop_exit
      _
    %318 = vsyncpa [#allocation4], 1
    %s319 = scalar_lea.sflag [#allocation4], 1
    %320 = vsyncpa %s319, 1

</llo_original>
